<compile_context>
chip_gen: v5e
topology: v5e:2x2
jax: 0.10.0
libtpu: 0.0.40
codegen_flags: <defaults>
</compile_context>

<pallas_src>
import jax
import jax.numpy as jnp
from jax.experimental import pallas as pl
from jax.experimental.pallas import tpu as pltpu


_LANE = 128
_SUBLANE = 8
_TARGET_BYTES_PER_STEP = 12 << 20   # VMEM-resident block bytes per grid step (pre double-buffering)


def _round_up(n, m):
    return ((n + m - 1) // m) * m


def _choose_rows(total_rows, per_row_vmem_bytes, block_rows=None):
    """Rows per grid step: sublane-aligned, sized to ~_TARGET_BYTES_PER_STEP of VMEM."""
    if total_rows <= _SUBLANE:
        return max(total_rows, 1)                      # single block spanning the tiny batch
    if block_rows is None:
        rows = (_TARGET_BYTES_PER_STEP // max(per_row_vmem_bytes, 1)) // _SUBLANE * _SUBLANE
    else:
        rows = _round_up(max(int(block_rows), 1), _SUBLANE)
    rows = max(_SUBLANE, rows)
    if rows > total_rows:
        rows = (total_rows // _SUBLANE) * _SUBLANE     # largest multiple of 8 <= total_rows
    return rows


def _vmem_limit_bytes(rows, per_row_vmem_bytes):
    est = 2 * rows * per_row_vmem_bytes + (8 << 20)    # double-buffered blocks + slack
    return int(min(max(est, 32 << 20), 48 << 20))


# ---------------------------------------------------------------------------
# Kernels
# ---------------------------------------------------------------------------

def _predict_packed_kernel(x_ref, wb_ref, b_ref, o_ref):
    # x: (R, 128) packed rows, wb: (128, k) block weight, b: (1,) SMEM scalar.
    x = x_ref[...].astype(jnp.float32)
    z = jnp.dot(x, wb_ref[...], preferred_element_type=jnp.float32) + b_ref[0]
    o_ref[...] = jax.nn.sigmoid(z).astype(o_ref.dtype)


def _predict_vpu_kernel(x_ref, w_ref, b_ref, o_ref):
    # x: (R, D), w: (1, D) lane-dense, b: (1,) SMEM scalar.  VPU mul + XLU lane reduce.
    x = x_ref[...].astype(jnp.float32)
    w = w_ref[...].astype(jnp.float32)
    z = jnp.sum(x * w, axis=-1, keepdims=True) + b_ref[0]
    o_ref[...] = jax.nn.sigmoid(z).astype(o_ref.dtype)


def _make_loss_packed_kernel(valid_rows, rows_per_block):
    def kernel(x_ref, wb_ref, b_ref, y_ref, o_ref):
        i = pl.program_id(0)
        x = x_ref[...].astype(jnp.float32)
        z = jnp.dot(x, wb_ref[...], preferred_element_type=jnp.float32) + b_ref[0]
        diff = jax.nn.sigmoid(z) - y_ref[...].astype(jnp.float32)
        row = jax.lax.broadcasted_iota(jnp.int32, diff.shape, 0) + i * rows_per_block
        sq = jnp.where(row < valid_rows, diff * diff, 0.0)      # mask ragged-edge garbage
        ssq = jnp.sum(jnp.sum(sq, axis=1, keepdims=True), axis=0, keepdims=True)  # (1, 1)
        o_ref[...] = jnp.broadcast_to(ssq, o_ref.shape)          # per-tile partial (splat)
    return kernel


def _make_loss_vpu_kernel(valid_rows, rows_per_block):
    def kernel(x_ref, w_ref, b_ref, y_ref, o_ref):
        i = pl.program_id(0)
        x = x_ref[...].astype(jnp.float32)
        w = w_ref[...].astype(jnp.float32)
        z = jnp.sum(x * w, axis=-1, keepdims=True) + b_ref[0]
        diff = jax.nn.sigmoid(z) - y_ref[...].astype(jnp.float32)
        row = jax.lax.broadcasted_iota(jnp.int32, diff.shape, 0) + i * rows_per_block
        sq = jnp.where(row < valid_rows, diff * diff, 0.0)
        ssq = jnp.sum(jnp.sum(sq, axis=1, keepdims=True), axis=0, keepdims=True)  # (1, 1)
        o_ref[...] = jnp.broadcast_to(ssq, o_ref.shape)
    return kernel


# ---------------------------------------------------------------------------
# Wrapper
# ---------------------------------------------------------------------------

def torch_model_forward(x, weight, bias, y=None, block_rows=None):
    """Replicates TorchModel.forward.

    x:      (B, D), any float dtype (kept native on the wire; upcast to f32 in-kernel)
    weight: (1, D) (nn.Linear.weight layout) or (D,)
    bias:   (1,)
    y:      optional (B, 1) targets
    Returns y_pred (B, 1) f32 if y is None, else scalar MSE loss (f32).
    """
    B, D = x.shape
    w = jnp.asarray(weight).reshape(1, D).astype(jnp.float32)
    b = jnp.asarray(bias).reshape(1).astype(jnp.float32)
    itemsize = x.dtype.itemsize
    compute_loss = y is not None

    k = _LANE // D if (0 < D < _LANE and _LANE % D == 0) else 1
    use_packed = (k >= 2) and (B % k == 0) and (B // k >= _SUBLANE)

    b_spec = pl.BlockSpec(memory_space=pltpu.MemorySpace.SMEM)

    if use_packed:
        total_rows = B // k
        xk = x.reshape(total_rows, _LANE)                          # free contiguous reshape
        # Block weight: Wb[s*D + d, s] = w[d]  ->  z_packed[r, s] = <x[r*k + s, :], w>
        w_arg = jnp.kron(jnp.eye(k, dtype=jnp.float32), w.reshape(D, 1))   # (128, k)
        w_spec = pl.BlockSpec((_LANE, k), lambda i: (0, 0))
        out_cols = k
        x_cols_vmem = _LANE
    else:
        total_rows = B
        xk = x
        w_arg = w
        w_spec = pl.BlockSpec((1, D), lambda i: (0, 0))
        out_cols = 1
        x_cols_vmem = _round_up(D, _LANE)                          # lane padding in VMEM

    per_row_vmem = x_cols_vmem * itemsize + _LANE * 4              # x block + out/y block per row
    rows = _choose_rows(total_rows, per_row_vmem, block_rows)
    num_tiles = pl.cdiv(total_rows, rows)
    vmem_limit = _vmem_limit_bytes(rows, per_row_vmem)

    x_spec = pl.BlockSpec((rows, xk.shape[1]), lambda i: (i, 0))
    params = pltpu.CompilerParams(
        dimension_semantics=("parallel",),                         # both TCs on v7x
        vmem_limit_bytes=vmem_limit,
    )

    if not compute_loss:
        cost = pl.CostEstimate(
            flops=2 * B * D + 4 * B,
            transcendentals=B,
            bytes_accessed=B * D * itemsize + B * 4 + _LANE * out_cols * 4,
        )
        kernel = _predict_packed_kernel if use_packed else _predict_vpu_kernel
        out = pl.pallas_call(
            kernel,
            out_shape=jax.ShapeDtypeStruct((total_rows, out_cols), jnp.float32),
            grid_spec=pltpu.PrefetchScalarGridSpec(
                num_scalar_prefetch=0,
                grid=(num_tiles,),
                in_specs=[x_spec, w_spec, b_spec],
                out_specs=pl.BlockSpec((rows, out_cols), lambda i: (i, 0)),
            ),
            compiler_params=params,
            cost_estimate=cost,
        )(xk, w_arg, b)
        return out.reshape(B, 1)

    yk = jnp.asarray(y).reshape(total_rows, out_cols)              # free contiguous reshape
    y_spec = pl.BlockSpec((rows, out_cols), lambda i: (i, 0))
    cost = pl.CostEstimate(
        flops=2 * B * D + 8 * B,
        transcendentals=B,
        bytes_accessed=(B * D * itemsize + B * yk.dtype.itemsize
                        + num_tiles * _SUBLANE * _LANE * 4),
    )
    kernel = (_make_loss_packed_kernel(total_rows, rows) if use_packed
              else _make_loss_vpu_kernel(total_rows, rows))
    partials = pl.pallas_call(
        kernel,
        out_shape=jax.ShapeDtypeStruct((num_tiles, _SUBLANE, _LANE), jnp.float32),
        grid_spec=pltpu.PrefetchScalarGridSpec(
            num_scalar_prefetch=0,
            grid=(num_tiles,),
            in_specs=[x_spec, w_spec, b_spec, y_spec],
            out_specs=pl.BlockSpec((1, _SUBLANE, _LANE), lambda i: (i, 0, 0)),
        ),
        compiler_params=params,
        cost_estimate=cost,
    )(xk, w_arg, b, yk)
    # Per-tile partial sums of squares -> mean over the true batch.
    return jnp.sum(partials[:, 0, 0]) / B


if __name__ == "__main__":
    key = jax.random.PRNGKey(0)
    kx, kw, kb, ky, kx2, ky2, kx3, kw3, kb3, ky3 = jax.random.split(key, 10)

    # --- Small case consistent with TorchModel: batch=8, input_size=32 (fallback VPU path) ---
    B, D = 8, 32
    x = jax.random.normal(kx, (B, D), dtype=jnp.float32)
    weight = jax.random.normal(kw, (1, D), dtype=jnp.float32) * 0.1    # nn.Linear(D,1).weight
    bias = jax.random.normal(kb, (1,), dtype=jnp.float32) * 0.1        # nn.Linear(D,1).bias
    y = jax.random.uniform(ky, (B, 1), dtype=jnp.float32)

    y_pred = jax.block_until_ready(torch_model_forward(x, weight, bias))
    loss = jax.block_until_ready(torch_model_forward(x, weight, bias, y))
    ref_pred = jax.nn.sigmoid(x @ weight.T + bias)
    ref_loss = jnp.mean((ref_pred - y) ** 2)
    assert y_pred.shape == (B, 1)
    assert jnp.allclose(y_pred, ref_pred, atol=1e-5, rtol=1e-5)
    assert jnp.allclose(loss, ref_loss, atol=1e-5, rtol=1e-5)

    # --- Multi-tile packed (MXU) path with a ragged edge block, no wrapper-side padding ---
    B2 = 300
    x2 = jax.random.normal(kx2, (B2, D), dtype=jnp.float32)
    y2 = jax.random.uniform(ky2, (B2, 1), dtype=jnp.float32)
    y_pred2 = jax.block_until_ready(torch_model_forward(x2, weight, bias, block_rows=32))
    loss2 = jax.block_until_ready(torch_model_forward(x2, weight, bias, y2, block_rows=32))
    ref_pred2 = jax.nn.sigmoid(x2 @ weight.T + bias)
    ref_loss2 = jnp.mean((ref_pred2 - y2) ** 2)
    assert y_pred2.shape == (B2, 1)
    assert jnp.allclose(y_pred2, ref_pred2, atol=1e-5, rtol=1e-5)
    assert jnp.allclose(loss2, ref_loss2, atol=1e-5, rtol=1e-5)

    # --- Fallback (VPU) path with input_size=5 like the original TorchDemo, multi-tile ---
    B3, D3 = 300, 5
    x3 = jax.random.normal(kx3, (B3, D3), dtype=jnp.float32)
    w3 = jax.random.normal(kw3, (1, D3), dtype=jnp.float32) * 0.1
    b3 = jax.random.normal(kb3, (1,), dtype=jnp.float32) * 0.1
    y3 = jax.random.uniform(ky3, (B3, 1), dtype=jnp.float32)
    y_pred3 = jax.block_until_ready(torch_model_forward(x3, w3, b3, block_rows=128))
    loss3 = jax.block_until_ready(torch_model_forward(x3, w3, b3, y3, block_rows=128))
    ref_pred3 = jax.nn.sigmoid(x3 @ w3.T + b3)
    ref_loss3 = jnp.mean((ref_pred3 - y3) ** 2)
    assert jnp.allclose(y_pred3, ref_pred3, atol=1e-5, rtol=1e-5)
    assert jnp.allclose(loss3, ref_loss3, atol=1e-5, rtol=1e-5)

    # --- Native bf16 x on the wire (upcast inside the kernel) ---
    x_bf16 = x.astype(jnp.bfloat16)
    y_pred_bf16 = jax.block_until_ready(torch_model_forward(x_bf16, weight, bias))
    ref_pred_bf16 = jax.nn.sigmoid(x_bf16.astype(jnp.float32) @ weight.T + bias)
    assert jnp.allclose(y_pred_bf16, ref_pred_bf16, atol=1e-5, rtol=1e-5)

    print("KERNEL_OK")
</pallas_src>

<mosaic_0001>
module attributes {stable_mosaic.version = 11 : i64} {
  func.func @_predict_vpu_kernel(%arg0: i32, %arg1: memref<8x32xf32, #tpu.memory_space<vmem>>, %arg2: memref<1x32xf32, #tpu.memory_space<vmem>>, %arg3: memref<1xf32, #tpu.memory_space<smem>>, %arg4: memref<8x1xf32, #tpu.memory_space<vmem>>) attributes {dimension_semantics = [#tpu.dimension_semantics<parallel>], iteration_bounds = array<i64: 1>, scalar_prefetch = 0 : i64, scratch_operands = 0 : i64, tpu.core_type = #tpu.core_type<tc>, window_params = [{transform_indices = @transform_0, window_bounds = array<i64: 8, 32>}, {pipeline_mode = #tpu.pipeline_mode<synchronous>, transform_indices = @transform_1, window_bounds = array<i64: 1, 32>}, {transform_indices = @transform_2, window_bounds = array<i64: 1>}, {transform_indices = @transform_3, window_bounds = array<i64: 8, 1>}]} {
    %c0 = arith.constant 0 : index
    %c0_0 = arith.constant 0 : index
    %0 = vector.load %arg1[%c0, %c0_0] : memref<8x32xf32, #tpu.memory_space<vmem>>, vector<8x32xf32>
    %c0_1 = arith.constant 0 : index
    %c0_2 = arith.constant 0 : index
    %1 = vector.load %arg2[%c0_1, %c0_2] : memref<1x32xf32, #tpu.memory_space<vmem>>, vector<1x32xf32>
    %2 = vector.broadcast %1 : vector<1x32xf32> to vector<8x32xf32>
    %3 = arith.mulf %0, %2 : vector<8x32xf32>
    %cst = arith.constant dense<0.000000e+00> : vector<8xf32>
    %4 = vector.multi_reduction <add>, %3, %cst [1] : vector<8x32xf32> to vector<8xf32>
    %5 = vector.shape_cast %4 : vector<8xf32> to vector<8x1xf32>
    %c0_3 = arith.constant 0 : index
    %6 = memref.load %arg3[%c0_3] : memref<1xf32, #tpu.memory_space<smem>>
    %7 = vector.broadcast %6 : f32 to vector<8x1xf32>
    %8 = arith.addf %5, %7 : vector<8x1xf32>
    %9 = arith.negf %8 : vector<8x1xf32>
    %10 = math.exp %9 : vector<8x1xf32>
    %cst_4 = arith.constant 1.000000e+00 : f32
    %11 = vector.broadcast %cst_4 : f32 to vector<8x1xf32>
    %12 = arith.addf %11, %10 : vector<8x1xf32>
    %13 = arith.divf %11, %12 : vector<8x1xf32>
    %c0_5 = arith.constant 0 : index
    %c0_6 = arith.constant 0 : index
    %14 = vector.load %arg4[%c0_5, %c0_6] : memref<8x1xf32, #tpu.memory_space<vmem>>, vector<8x1xf32>
    tpu.vector_store %arg4[%c0_5, %c0_6], %13 {strides = array<i32>} : memref<8x1xf32, #tpu.memory_space<vmem>>, vector<8x1xf32>,
    return
  }
  func.func @transform_0(%arg0: i32) -> (i32, i32) {
    %c0_i32 = arith.constant 0 : i32
    %c0_i32_0 = arith.constant 0 : i32
    return %arg0, %c0_i32 : i32, i32
  }
  func.func @transform_1(%arg0: i32) -> (i32, i32) {
    %c0_i32 = arith.constant 0 : i32
    %c0_i32_0 = arith.constant 0 : i32
    %c0_i32_1 = arith.constant 0 : i32
    return %c0_i32, %c0_i32_0 : i32, i32
  }
  func.func @transform_2(%arg0: i32) -> i32 {
    %c0_i32 = arith.constant 0 : i32
    %c0_i32_0 = arith.constant 0 : i32
    return %c0_i32 : i32
  }
  func.func @transform_3(%arg0: i32) -> (i32, i32) {
    %c0_i32 = arith.constant 0 : i32
    %c0_i32_0 = arith.constant 0 : i32
    return %arg0, %c0_i32 : i32, i32
  }
}

</mosaic_0001>

<llo_original>
// kernel: tpu_custom_call.1
$region0: #{tpu_custom_call.1}
  #allocation0 [shape = 'u32[]', space=smem, size = 0x4, offset = 0x4, fixed_abs, tag = 'smem constant byte address 0x4 - core index']
  #allocation1 [shape = 'u32[72,128]{1,0:T(1,128)}', space=vmem, size = 0x9000, scoped, tag = 'internal scratch']
  #allocation2 [shape = 'f32[1]{0:T(128)S(6)}', space=smem, size = 0x200, scoped, tag = 'scoped memory for tpu_custom_call.1']
  %s0 = inlined_call_operand.hbm [shape: f32[8,32], index: 0, kind: input, shape index: {}]
  %s1 = inlined_call_operand.vmem [shape: f32[1,32], index: 1, kind: input, shape index: {}]
  %s2 = inlined_call_operand.<no memory space> [shape: f32[1], index: 2, kind: input, shape index: {}]
  %s3 = inlined_call_operand.vmem [shape: f32[8,1], index: 3, kind: output, shape index: {}]
  %s4 = sld [smem:[#allocation0]]
  $region26: #{tpu_custom_call.1} parent=0
    _
  %s6 = ssub.s32 1, %s4
  %s7 = scalar_select 0, %s6, %s4
  %8 = sst [smem:[#allocation2]] %s2
  $region1: #{tpu_custom_call.1} parent=0
    #allocation3 [shape = 'u8[4096]{0}', space=vmem, size = 0x1000, scoped, tag = 'input window, operand 0, single buffered']
    #allocation4 [shape = 's32[1]{0}', space=sflag, size = 0x4, scoped, tag = 'scoped memory for tpu_custom_call.1']
    %9 = vsyncpa [#allocation4], 0
    // Predicated region
    $region2: #{tpu_custom_call.1} parent=1 // pred_check
      _
    $region3: #{tpu_custom_call.1} parent=1 // pred_check_branch
      %11 = sbr.rel (0) target = $region5
    $region4: #{tpu_custom_call.1} parent=1 // pred_region
      %13 = vsyncadd [#allocation4], 0
      %s15 = sshll.u32 %s0, 4
      %s16 = int_to_ptr.hbm [resolvable:$true] %s15
      %s17 = sshll.u32 [#allocation3], 4
      %s18 = int_to_ptr.vmem [resolvable:$true] %s17
      %20 = dma.hbm_to_vmem [thread:$0]  %s16, 128, %s18, [#allocation4]
    $region5: #{tpu_custom_call.1} parent=1 // pred_fallthru
      _
    // Predicated region
    $region6: #{tpu_custom_call.1} parent=1 // pred_check
      _
    $region7: #{tpu_custom_call.1} parent=1 // pred_check_branch
      %22 = sbr.rel (0) target = $region9
    $region8: #{tpu_custom_call.1} parent=1 // pred_region
      _
    $region9: #{tpu_custom_call.1} parent=1 // pred_fallthru
      _
    // Predicated region
    $region10: #{tpu_custom_call.1} parent=1 // pred_check
      _
    $region11: #{tpu_custom_call.1} parent=1 // pred_check_branch
      %24 = sbr.rel (0) target = $region13
    $region12: #{tpu_custom_call.1} parent=1 // pred_region
      _
    $region13: #{tpu_custom_call.1} parent=1 // pred_fallthru
      _
    // Predicated region
    $region14: #{tpu_custom_call.1} parent=1 // pred_check
      _
    $region15: #{tpu_custom_call.1} parent=1 // pred_check_branch
      %26 = sbr.rel (0) target = $region17
    $region16: #{tpu_custom_call.1} parent=1 // pred_region
      %28 = dma.done [#allocation4], 128
    $region17: #{tpu_custom_call.1} parent=1 // pred_fallthru
      _
    %v29 = vld [vmem:[#allocation3] sm:$0xff]
    %v30 = vld [vmem:[%s1] sm:$0x1]
    %v32 = vperm.slane %v30, 0
    %v34 = vmul.f32 %v29, %v32
    %vm35 = vcmask 261120
    %v36 = vsel %vm35, %v34, 0.0
    %37 = vadd.xlane.f32.xlu0 %v36
    %v38 = vpop.xlane.xlu0 %37
    %s39 = sld [smem:[#allocation2]]
    %v40 = vstv %s39
    %v41 = vadd.f32 %v38, %v40
    %v42 = vxor.u32 %v41, 2147483648
    %v43 = vmul.f32 %v42, 1.442695
    %v44 = vpow.pop %v43
    %v45 = vadd.f32 %v44, 1.0
    %v46 = vrcp.pop %v45
    %v47 = vmul.f32 %v45, %v46
    %v48 = vsub.f32 1.0, %v47
    %v49 = vmul.f32 %v46, %v48
    %v50 = vadd.f32 %v46, %v49
    %vm51 = vweird.f32 %v45
    %vm52 = vweird.f32 %v46
    %vm53 = vmor %vm51, %vm52
    %v54 = vsel %vm53, %v46, %v50
    %v55 = vand.u32 2147483647, %v45
    %vm56 = vcmp.eq.f32.partialorder %v55, 8.507059e+37
    %v57 = vand.u32 %v45, 2147483648
    %v58 = vor.u32 1.1754944e-38, %v57
    %v59 = vsel %vm56, %v58, %v54
    %v60 = vmul.f32 1.0, %v59
    %vm61 = vcmask 7168
    %62 = vst.msk [vmem:[%s3] sm:$0xff] %vm61, %v60
    // Predicated region
    $region18: #{tpu_custom_call.1} parent=1 // pred_check
      _
    $region19: #{tpu_custom_call.1} parent=1 // pred_check_branch
      %64 = sbr.rel (0) target = $region21
    $region20: #{tpu_custom_call.1} parent=1 // pred_region
      _
    $region21: #{tpu_custom_call.1} parent=1 // pred_fallthru
      _
    // Predicated region
    $region22: #{tpu_custom_call.1} parent=1 // pred_check
      _
    $region23: #{tpu_custom_call.1} parent=1 // pred_check_branch
      %66 = sbr.rel (0) target = $region25
    $region24: #{tpu_custom_call.1} parent=1 // pred_region
      _
    $region25: #{tpu_custom_call.1} parent=1 // pred_fallthru
      _
    %67 = vsyncpa [#allocation4], 1

</llo_original>
